<compile_context>
chip_gen: v7x
topology: tpu7x:2x2x1
jax: 0.10.0
libtpu: 0.0.40
codegen_flags: <defaults>
</compile_context>

<pallas_src>
import jax
import jax.numpy as jnp
from jax import lax
from jax.experimental import pallas as pl
from jax.experimental.pallas import tpu as pltpu

_MIB = 1024 * 1024


def _round_up(x: int, m: int) -> int:
    return ((x + m - 1) // m) * m


def _sublane_granule(dtype) -> int:
    # Sub-32-bit dtypes pack along sublanes: (8,128) f32, (16,128) bf16,
    # (32,128) int8/fp8.
    return max(8, 32 // jnp.dtype(dtype).itemsize)


def _choose_tile(dim: int, target: int, granule: int):
    """Pick (tile, padded_dim): tile divides padded_dim, tile % granule == 0,
    tile <= target unless the whole (rounded) dim is already smaller."""
    target = _round_up(target, granule)
    dim_r = _round_up(dim, granule)
    if dim_r <= target:
        return dim_r, dim_r
    return target, _round_up(dim, target)


def _vmem_capacity_bytes() -> int:
    try:
        return int(pltpu.get_tpu_info().vmem_capacity_bytes)
    except Exception:
        return 128 * _MIB  # conservative-ish default (v5e/v6e)


def _is_v7x() -> bool:
    try:
        kind = jax.devices()[0].device_kind.lower()
        return ("v7" in kind) or ("tpu7" in kind)
    except Exception:
        return False


def _make_kernel(tk: int, x_k_resident: bool):
    def kernel(adapter_ref, x_ref, w_ref, o_ref, acc_ref):
        # adapter_ref (SMEM, scalar-prefetched) is consumed by the weight
        # index_map in the aligned path; unused in the body.
        k = pl.program_id(2)

        @pl.when(k == 0)
        def _():
            acc_ref[...] = jnp.zeros_like(acc_ref)

        if x_k_resident:
            # x is resident across the (j, k) loops; slice the K chunk here.
            start = pl.multiple_of(k * tk, 128)
            x_blk = x_ref[:, pl.ds(start, tk)]
        else:
            x_blk = x_ref[...]

        # x_blk: (tm, tk), w_ref: (tn, tk).  Contract both on their last (K)
        # dim -> (tm, tn); this is x @ w.T without an XLU transpose.
        acc_ref[...] += lax.dot_general(
            x_blk,
            w_ref[...],
            dimension_numbers=(((1,), (1,)), ((), ())),
            preferred_element_type=jnp.float32,
        )

        @pl.when(k == pl.num_programs(2) - 1)
        def _():
            o_ref[...] = acc_ref[...].astype(o_ref.dtype)

    return kernel


def multi_lora_linear(x, weight, adapter_ids=None,
                      *, tm_target=256, tn_target=1024, tk_target=2048):
    """y = x @ weight[adapter_ids].T, matching MultiLoraLinear.forward."""
    if adapter_ids is None:
        adapter_ids = 0
    # F.linear only accepts a 2-D weight, so after .squeeze() exactly one
    # adapter must be selected.
    adapter = jnp.asarray(adapter_ids, dtype=jnp.int32).reshape(-1)
    if adapter.shape[0] != 1:
        raise ValueError(
            f"MultiLoraLinear forward expects a single adapter id, got "
            f"{adapter.shape[0]}"
        )
    max_loras, output_size, input_size = weight.shape
    # TODO(synk): PyTorch raises on out-of-range adapter ids; a traced id
    # cannot raise on device, so clamp to keep the DMA index in bounds.
    adapter = jnp.clip(adapter, 0, max_loras - 1)

    orig_lead = x.shape[:-1]
    m = 1
    for d in orig_lead:
        m *= d
    x2d = x.reshape(m, input_size)

    x_item = jnp.dtype(x.dtype).itemsize
    w_item = jnp.dtype(weight.dtype).itemsize
    o_item = x_item

    # --- generation-aware VMEM budget ------------------------------------
    vmem_cap = _vmem_capacity_bytes()
    # Leave headroom for Mosaic internal scratch; never ask for >~100 MiB.
    vmem_soft_cap = max(24 * _MIB, min(vmem_cap - 16 * _MIB, 100 * _MIB))
    tile_budget = int(0.75 * vmem_soft_cap)

    gm = _sublane_granule(x.dtype)

    # --- tile selection (shrink targets until the working set fits) ------
    tm_t, tn_t, tk_t = tm_target, tn_target, tk_target
    while True:
        tm, m_pad = _choose_tile(m, tm_t, gm)
        tn, n_pad = _choose_tile(output_size, tn_t, 128)
        tk, k_pad = _choose_tile(input_size, tk_t, 128)

        n_grid = n_pad // tn
        k_grid = k_pad // tk

        # Keep x resident across (j, k) when it is cheap, so it is not
        # re-streamed for every N tile (prefill shapes).
        x_resident = (
            n_grid > 1
            and k_grid > 1
            and 2 * tm * k_pad * x_item <= max(tile_budget // 4, 4 * _MIB)
        )
        x_buf = tm * (k_pad if x_resident else tk) * x_item

        working_set = (
            2 * tn * tk * w_item      # double-buffered weight tile
            + 2 * x_buf               # double-buffered x
            + 2 * tm * tn * o_item    # double-buffered output tile
            + tm * tn * 4             # f32 accumulator scratch
        )
        if working_set <= tile_budget:
            break
        if tk_t >= tn_t and tk_t > 512:
            tk_t //= 2
        elif tn_t > 512:
            tn_t //= 2
        elif tk_t > 512:
            tk_t //= 2
        elif tm_t > 64:
            tm_t //= 2
        else:
            break

    m_grid = m_pad // tm
    # v7x megacore: with M grid == 1 only the N axis can be split across the
    # two TensorCores; make sure there are >= 2 N tiles when possible.
    if _is_v7x() and m_grid == 1 and n_pad // tn == 1 and n_pad % 256 == 0:
        tn = n_pad // 2

    n_grid = n_pad // tn
    k_grid = k_pad // tk
    grid = (m_grid, n_grid, k_grid)

    # --- pad activations (small) and pick the weight path -----------------
    if (m_pad != m) or (k_pad != input_size):
        x2d = jnp.pad(x2d, ((0, m_pad - m), (0, k_pad - input_size)))

    if (n_pad != output_size) or (k_pad != input_size):
        # Unaligned: gather ONLY the selected adapter and pad that slice
        # (avoids per-call padding of the whole max_loras stack).
        w_sel = lax.dynamic_index_in_dim(weight, adapter[0], axis=0,
                                         keepdims=False)
        w_arg = jnp.pad(
            w_sel, ((0, n_pad - output_size), (0, k_pad - input_size)))
        w_spec = pl.BlockSpec((tn, tk), lambda i, j, k, a: (j, k))
    else:
        # Aligned: the scalar-prefetched adapter id selects the LoRA slice in
        # the index_map; only that adapter is ever DMA'd.
        w_arg = weight
        w_spec = pl.BlockSpec(
            (pl.Squeezed(), tn, tk), lambda i, j, k, a: (a[0], j, k))

    if x_resident:
        x_spec = pl.BlockSpec((tm, k_pad), lambda i, j, k, a: (i, 0))
    else:
        x_spec = pl.BlockSpec((tm, tk), lambda i, j, k, a: (i, k))

    grid_spec = pltpu.PrefetchScalarGridSpec(
        num_scalar_prefetch=1,
        grid=grid,
        in_specs=[x_spec, w_spec],
        out_specs=pl.BlockSpec((tm, tn), lambda i, j, k, a: (i, j)),
        scratch_shapes=[pltpu.VMEM((tm, tn), jnp.float32)],
    )

    vmem_limit = int(min(vmem_soft_cap, max(32 * _MIB, 2 * working_set)))

    cost = pl.CostEstimate(
        flops=2 * m * output_size * input_size,
        transcendentals=0,
        bytes_accessed=(
            m * input_size * x_item
            + output_size * input_size * w_item
            + m * output_size * o_item
        ),
    )

    out = pl.pallas_call(
        _make_kernel(tk, x_resident),
        out_shape=jax.ShapeDtypeStruct((m_pad, n_pad), x.dtype),
        grid_spec=grid_spec,
        compiler_params=pltpu.CompilerParams(
            dimension_semantics=("parallel", "parallel", "arbitrary"),
            vmem_limit_bytes=vmem_limit,
        ),
        cost_estimate=cost,
    )(adapter, x2d, w_arg)

    out = out[:m, :output_size]
    return out.reshape(*orig_lead, output_size)


if __name__ == "__main__":
    # Module config (small, synthetic).
    max_loras = 3
    input_size = 32
    output_size = 64
    batch, seq = 2, 8

    key = jax.random.PRNGKey(0)
    k_w, k_x = jax.random.split(key)

    # nn.Parameter is zero-initialized in the module; fill with deterministic
    # synthetic values so the kernel output is non-trivial.
    weight = jax.random.normal(
        k_w, (max_loras, output_size, input_size), dtype=jnp.float32
    ) * 0.05
    x = jax.random.normal(k_x, (batch, seq, input_size), dtype=jnp.float32)

    adapter_ids = jnp.array([2], dtype=jnp.int32)

    # Pallas kernel (unaligned shapes -> padded selected-adapter path).
    y = jax.block_until_ready(multi_lora_linear(x, weight, adapter_ids))

    # adapter_ids=None path (adapter 0).
    y_none = jax.block_until_ready(multi_lora_linear(x, weight, None))

    # Pure-JAX reference (F.linear semantics: x @ W.T).
    y_ref = jnp.einsum("bsi,oi->bso", x, weight[2])
    y_none_ref = jnp.einsum("bsi,oi->bso", x, weight[0])

    assert y.shape == (batch, seq, output_size)
    assert jnp.allclose(y, y_ref, atol=1e-5, rtol=1e-5)
    assert jnp.allclose(y_none, y_none_ref, atol=1e-5, rtol=1e-5)

    # Larger, non-aligned shape with reduced tile targets to exercise the
    # multi-step grid (several K and N tiles), the K-resident x path, and the
    # accumulator init/finalize logic.
    in2, out2, m2 = 1536, 1280, 48
    k_w2, k_x2 = jax.random.split(k_x)
    w2 = jax.random.normal(k_w2, (max_loras, out2, in2), dtype=jnp.float32) * 0.02
    x2 = jax.random.normal(k_x2, (m2, in2), dtype=jnp.float32)
    y2 = jax.block_until_ready(
        multi_lora_linear(x2, w2, jnp.array([1]),
                          tm_target=128, tn_target=512, tk_target=512))
    y2_ref = jnp.einsum("mi,oi->mo", x2, w2[1])
    assert jnp.allclose(y2, y2_ref, atol=2e-4, rtol=2e-4)

    # Aligned shape: exercises the no-copy, scalar-prefetch weight path where
    # the 3-D weight stack goes straight into the kernel.
    in3, out3, m3 = 768, 512, 40
    k_w3, k_x3 = jax.random.split(k_x2)
    w3 = jax.random.normal(k_w3, (max_loras, out3, in3), dtype=jnp.float32) * 0.02
    x3 = jax.random.normal(k_x3, (m3, in3), dtype=jnp.float32)
    y3 = jax.block_until_ready(multi_lora_linear(x3, w3, jnp.array([0])))
    y3_ref = jnp.einsum("mi,oi->mo", x3, w3[0])
    assert jnp.allclose(y3, y3_ref, atol=2e-4, rtol=2e-4)

    print("KERNEL_OK")
</pallas_src>

<mosaic_0001>
module attributes {stable_mosaic.version = 11 : i64} {
  func.func @kernel(%arg0: i32, %arg1: i32, %arg2: i32, %arg3: memref<1xi32, #tpu.memory_space<smem>>, %arg4: memref<16x128xf32, #tpu.memory_space<vmem>>, %arg5: memref<128x128xf32, #tpu.memory_space<vmem>>, %arg6: memref<16x128xf32, #tpu.memory_space<vmem>>, %arg7: memref<16x128xf32, #tpu.memory_space<vmem>>) attributes {dimension_semantics = [#tpu.dimension_semantics<parallel>, #tpu.dimension_semantics<parallel>, #tpu.dimension_semantics<arbitrary>], iteration_bounds = array<i64: 1, 1, 1>, scalar_prefetch = 1 : i64, scratch_operands = 1 : i64, tpu.core_type = #tpu.core_type<tc>, window_params = [{transform_indices = @transform_0, window_bounds = array<i64: 16, 128>}, {transform_indices = @transform_1, window_bounds = array<i64: 128, 128>}, {transform_indices = @transform_2, window_bounds = array<i64: 16, 128>}]} {
    %c0_i32 = arith.constant 0 : i32
    %0 = arith.cmpi eq, %arg2, %c0_i32 : i32
    %1 = arith.extui %0 : i1 to i32
    %c0_i32_0 = arith.constant 0 : i32
    %2 = arith.cmpi ne, %1, %c0_i32_0 : i32
    scf.if %2 {
      %cst_10 = arith.constant 0.000000e+00 : f32
      %12 = vector.broadcast %cst_10 : f32 to vector<16x128xf32>
      %c0_11 = arith.constant 0 : index
      %c0_12 = arith.constant 0 : index
      %13 = vector.load %arg7[%c0_11, %c0_12] : memref<16x128xf32, #tpu.memory_space<vmem>>, vector<16x128xf32>
      tpu.vector_store %arg7[%c0_11, %c0_12], %12 {strides = array<i32>} : memref<16x128xf32, #tpu.memory_space<vmem>>, vector<16x128xf32>,
    } else {
    }
    %c0 = arith.constant 0 : index
    %c0_1 = arith.constant 0 : index
    %3 = vector.load %arg4[%c0, %c0_1] : memref<16x128xf32, #tpu.memory_space<vmem>>, vector<16x128xf32>
    %c0_2 = arith.constant 0 : index
    %c0_3 = arith.constant 0 : index
    %4 = vector.load %arg7[%c0_2, %c0_3] : memref<16x128xf32, #tpu.memory_space<vmem>>, vector<16x128xf32>
    %c0_4 = arith.constant 0 : index
    %c0_5 = arith.constant 0 : index
    %5 = vector.load %arg5[%c0_4, %c0_5] : memref<128x128xf32, #tpu.memory_space<vmem>>, vector<128x128xf32>
    %cst = arith.constant dense<0.000000e+00> : vector<16x128xf32>
    %6 = tpu.matmul %3, %5, %cst {dimension_numbers = #tpu.dot_dimension_numbers<[1], [1], [0], [0], [0, 0, 1, 0], [], []>} : vector<16x128xf32>, vector<128x128xf32>, vector<16x128xf32> -> vector<16x128xf32>
    %7 = arith.addf %4, %6 : vector<16x128xf32>
    %c0_6 = arith.constant 0 : index
    %c0_7 = arith.constant 0 : index
    %8 = vector.load %arg7[%c0_6, %c0_7] : memref<16x128xf32, #tpu.memory_space<vmem>>, vector<16x128xf32>
    tpu.vector_store %arg7[%c0_6, %c0_7], %7 {strides = array<i32>} : memref<16x128xf32, #tpu.memory_space<vmem>>, vector<16x128xf32>,
    %c0_i32_8 = arith.constant 0 : i32
    %9 = arith.cmpi eq, %arg2, %c0_i32_8 : i32
    %10 = arith.extui %9 : i1 to i32
    %c0_i32_9 = arith.constant 0 : i32
    %11 = arith.cmpi ne, %10, %c0_i32_9 : i32
    scf.if %11 {
      %c0_10 = arith.constant 0 : index
      %c0_11 = arith.constant 0 : index
      %12 = vector.load %arg7[%c0_10, %c0_11] : memref<16x128xf32, #tpu.memory_space<vmem>>, vector<16x128xf32>
      %c0_12 = arith.constant 0 : index
      %c0_13 = arith.constant 0 : index
      %13 = vector.load %arg6[%c0_12, %c0_13] : memref<16x128xf32, #tpu.memory_space<vmem>>, vector<16x128xf32>
      tpu.vector_store %arg6[%c0_12, %c0_13], %12 {strides = array<i32>} : memref<16x128xf32, #tpu.memory_space<vmem>>, vector<16x128xf32>,
    } else {
    }
    return
  }
  func.func @transform_0(%arg0: i32, %arg1: i32, %arg2: i32, %arg3: memref<1xi32, #tpu.memory_space<smem>>) -> (i32, i32) {
    %c0_i32 = arith.constant 0 : i32
    return %arg0, %arg2 : i32, i32
  }
  func.func @transform_1(%arg0: i32, %arg1: i32, %arg2: i32, %arg3: memref<1xi32, #tpu.memory_space<smem>>) -> (i32, i32) {
    %c0_i32 = arith.constant 0 : i32
    return %arg1, %arg2 : i32, i32
  }
  func.func @transform_2(%arg0: i32, %arg1: i32, %arg2: i32, %arg3: memref<1xi32, #tpu.memory_space<smem>>) -> (i32, i32) {
    %c0_i32 = arith.constant 0 : i32
    return %arg0, %arg1 : i32, i32
  }
}

</mosaic_0001>

<llo_original>
// kernel: tpu_custom_call.1
$region0: #{tpu_custom_call.1}
  #allocation0 [shape = 'u32[]', space=smem, size = 0x4, offset = 0x4, fixed_abs, tag = 'smem constant byte address 0x4 - core index']
  #allocation1 [shape = 'u32[144,128]{1,0:T(1,128)}', space=vmem, size = 0x12000, scoped, tag = 'internal scratch']
  #allocation2 [shape = 'f32[16,128]{1,0:T(8,128)}', space=vmem, size = 0x2000, scoped, tag = 'scratch operand']
  #allocation3 [shape = 's32[1]{0}', space=sflag, size = 0x4, scoped, tag = 'scoped memory for tpu_custom_call.1']
  #allocation4 [shape = 's32[1]{0:T(128)S(6)}', space=smem, size = 0x200, scoped, tag = 'prefetched SMEM operand 0']
  %s0 = inlined_call_operand.<no memory space> [shape: s32[1], index: 0, kind: input, shape index: {}]
  %s1 = inlined_call_operand.hbm [shape: f32[16,128], index: 1, kind: input, shape index: {}]
  %s2 = inlined_call_operand.hbm [shape: f32[128,128], index: 2, kind: input, shape index: {}]
  %s3 = inlined_call_operand.hbm [shape: f32[16,128], index: 3, kind: output, shape index: {}]
  %s4 = sld [smem:[#allocation0]]
  $region34: #{tpu_custom_call.1} parent=0
    _
  %s6 = ssub.s32 1, %s4
  %s7 = scalar_select 0, %s6, %s4
  %8 = sst [smem:[#allocation4]] %s0
  $region1: #{tpu_custom_call.1} parent=0
    #allocation5 [shape = 'u8[8192]{0}', space=vmem, size = 0x2000, scoped, tag = 'input window, operand 1, single buffered']
    #allocation6 [shape = 's32[1]{0}', space=sflag, size = 0x4, scoped, tag = 'scoped memory for tpu_custom_call.1']
    #allocation7 [shape = 's32[1]{0}', space=sflag, size = 0x4, scoped, tag = 'scoped memory for tpu_custom_call.1']
    #allocation8 [shape = 'u8[65536]{0}', space=vmem, size = 0x10000, scoped, tag = 'input window, operand 2, single buffered']
    #allocation9 [shape = 's32[1]{0}', space=sflag, size = 0x4, scoped, tag = 'scoped memory for tpu_custom_call.1']
    #allocation10 [shape = 'u8[8192]{0}', space=vmem, size = 0x2000, scoped, tag = 'output window, operand 0, single buffered']
    %9 = vsyncpa [#allocation6], 0
    %10 = vsyncpa [#allocation9], 0
    %11 = vsyncpa [#allocation7], 0
    // Predicated region
    $region2: #{tpu_custom_call.1} parent=1 // pred_check
      _
    $region3: #{tpu_custom_call.1} parent=1 // pred_check_branch
      %13 = sbr.rel (0) target = $region5
    $region4: #{tpu_custom_call.1} parent=1 // pred_region
      %s15 = ssub.s32 256, 256
      %16 = vsyncadd [#allocation6], %s15
      %s17 = sshll.u32 [#allocation5], 4
      %s18 = int_to_ptr.vmem [resolvable:$true] %s17
      %23 = dma.hbm_to_vmem [thread:$0]  %s1, 256, %s18, [#allocation6], 128, 128, 8
    $region5: #{tpu_custom_call.1} parent=1 // pred_fallthru
      _
    // Predicated region
    $region6: #{tpu_custom_call.1} parent=1 // pred_check
      _
    $region7: #{tpu_custom_call.1} parent=1 // pred_check_branch
      %25 = sbr.rel (0) target = $region9
    $region8: #{tpu_custom_call.1} parent=1 // pred_region
      %s27 = ssub.s32 2048, 2048
      %28 = vsyncadd [#allocation9], %s27
      %s29 = sshll.u32 [#allocation8], 4
      %s30 = int_to_ptr.vmem [resolvable:$true] %s29
      %35 = dma.hbm_to_vmem [thread:$0]  %s2, 2048, %s30, [#allocation9], 128, 128, 8
    $region9: #{tpu_custom_call.1} parent=1 // pred_fallthru
      _
    // Predicated region
    $region10: #{tpu_custom_call.1} parent=1 // pred_check
      _
    $region11: #{tpu_custom_call.1} parent=1 // pred_check_branch
      %37 = sbr.rel (0) target = $region13
    $region12: #{tpu_custom_call.1} parent=1 // pred_region
      %38 = dma.done [#allocation6], 256
    $region13: #{tpu_custom_call.1} parent=1 // pred_fallthru
      _
    // Predicated region
    $region14: #{tpu_custom_call.1} parent=1 // pred_check
      _
    $region15: #{tpu_custom_call.1} parent=1 // pred_check_branch
      %40 = sbr.rel (0) target = $region17
    $region16: #{tpu_custom_call.1} parent=1 // pred_region
      %41 = dma.done [#allocation9], 2048
    $region17: #{tpu_custom_call.1} parent=1 // pred_fallthru
      _
    %p42 = scmp.eq.s32.totalorder 0, 0
    // Predicated region
    $region18: #{tpu_custom_call.1} parent=1 // pred_check
      %p43 = pneg %p42
    $region19: #{tpu_custom_call.1} parent=1 // pred_check_branch
      %45 = sbr.rel (%p43) target = $region21
    $region20: #{tpu_custom_call.1} parent=1 // pred_region
      %46 = vst [vmem:[#allocation2] sm:$0xff] 0.0
      %47 = vst [vmem:[#allocation2 + $0x8] sm:$0xff] 0.0
    $region21: #{tpu_custom_call.1} parent=1 // pred_fallthru
      _
    %v48 = vld [vmem:[#allocation5] sm:$0xff]
    %v49 = vld [vmem:[#allocation5 + $0x8] sm:$0xff]
    %v50 = vld [vmem:[#allocation2] sm:$0xff]
    %v51 = vld [vmem:[#allocation2 + $0x8] sm:$0xff]
    %v52 = vld [vmem:[#allocation8] sm:$0xff]
    %v53 = vld [vmem:[#allocation8 + $0x8] sm:$0xff]
    %v54 = vld [vmem:[#allocation8 + $0x10] sm:$0xff]
    %v55 = vld [vmem:[#allocation8 + $0x18] sm:$0xff]
    %v56 = vld [vmem:[#allocation8 + $0x20] sm:$0xff]
    %v57 = vld [vmem:[#allocation8 + $0x28] sm:$0xff]
    %v58 = vld [vmem:[#allocation8 + $0x30] sm:$0xff]
    %v59 = vld [vmem:[#allocation8 + $0x38] sm:$0xff]
    %v60 = vld [vmem:[#allocation8 + $0x40] sm:$0xff]
    %v61 = vld [vmem:[#allocation8 + $0x48] sm:$0xff]
    %v62 = vld [vmem:[#allocation8 + $0x50] sm:$0xff]
    %v63 = vld [vmem:[#allocation8 + $0x58] sm:$0xff]
    %v64 = vld [vmem:[#allocation8 + $0x60] sm:$0xff]
    %v65 = vld [vmem:[#allocation8 + $0x68] sm:$0xff]
    %v66 = vld [vmem:[#allocation8 + $0x70] sm:$0xff]
    %v67 = vld [vmem:[#allocation8 + $0x78] sm:$0xff]
    %68 = vmatprep.subr.mxu0 0.0
    %69 = vmatpush1.xpose.msra.mxu0 %v52
    %70 = vmatprep.subr.mxu0 0.0
    %71 = vmatpush1.xpose.msra.mxu0 %v53
    %72 = vmatprep.subr.mxu0 0.0
    %73 = vmatpush1.xpose.msra.mxu0 %v54
    %74 = vmatprep.subr.mxu0 0.0
    %75 = vmatpush1.xpose.msra.mxu0 %v55
    %76 = vmatprep.subr.mxu0 0.0
    %77 = vmatpush1.xpose.msra.mxu0 %v56
    %78 = vmatprep.subr.mxu0 0.0
    %79 = vmatpush1.xpose.msra.mxu0 %v57
    %80 = vmatprep.subr.mxu0 0.0
    %81 = vmatpush1.xpose.msra.mxu0 %v58
    %82 = vmatprep.subr.mxu0 0.0
    %83 = vmatpush1.xpose.msra.mxu0 %v59
    %84 = vmatprep.subr.mxu0 0.0
    %85 = vmatpush1.xpose.msra.mxu0 %v60
    %86 = vmatprep.subr.mxu0 0.0
    %87 = vmatpush1.xpose.msra.mxu0 %v61
    %88 = vmatprep.subr.mxu0 0.0
    %89 = vmatpush1.xpose.msra.mxu0 %v62
    %90 = vmatprep.subr.mxu0 0.0
    %91 = vmatpush1.xpose.msra.mxu0 %v63
    %92 = vmatprep.subr.mxu0 0.0
    %93 = vmatpush1.xpose.msra.mxu0 %v64
    %94 = vmatprep.subr.mxu0 0.0
    %95 = vmatpush1.xpose.msra.mxu0 %v65
    %96 = vmatprep.subr.mxu0 0.0
    %97 = vmatpush1.xpose.msra.mxu0 %v66
    %98 = vmatprep.subr.mxu0 0.0
    %99 = vmatpush1.xpose.msra.mxu0 %v67
    %100 = vmatprep.subr.mxu0 0.0
    %101 = vmatpush1.xpose.msra.mxu0 0.0
    %102 = vmatprep.subr.mxu0 0.0
    %103 = vmatpush1.xpose.msra.mxu0 0.0
    %104 = vmatprep.subr.mxu0 0.0
    %105 = vmatpush1.xpose.msra.mxu0 0.0
    %106 = vmatprep.subr.mxu0 0.0
    %107 = vmatpush1.xpose.msra.mxu0 0.0
    %108 = vmatprep.subr.mxu0 0.0
    %109 = vmatpush1.xpose.msra.mxu0 0.0
    %110 = vmatprep.subr.mxu0 0.0
    %111 = vmatpush1.xpose.msra.mxu0 0.0
    %112 = vmatprep.subr.mxu0 0.0
    %113 = vmatpush1.xpose.msra.mxu0 0.0
    %114 = vmatprep.subr.mxu0 0.0
    %115 = vmatpush1.xpose.msra.mxu0 0.0
    %116 = vmatprep.subr.mxu0 0.0
    %117 = vmatpush1.xpose.msra.mxu0 0.0
    %118 = vmatprep.subr.mxu0 0.0
    %119 = vmatpush1.xpose.msra.mxu0 0.0
    %120 = vmatprep.subr.mxu0 0.0
    %121 = vmatpush1.xpose.msra.mxu0 0.0
    %122 = vmatprep.subr.mxu0 0.0
    %123 = vmatpush1.xpose.msra.mxu0 0.0
    %124 = vmatprep.subr.mxu0 0.0
    %125 = vmatpush1.xpose.msra.mxu0 0.0
    %126 = vmatprep.subr.mxu0 0.0
    %127 = vmatpush1.xpose.msra.mxu0 0.0
    %128 = vmatprep.subr.mxu0 0.0
    %129 = vmatpush1.xpose.msra.mxu0 0.0
    %130 = vmatprep.subr.mxu0 0.0
    %131 = vmatpush1.xpose.msra.mxu0 0.0
    %132 = vmatprep.mubr.f32.mxu0 0.0
    %133 = vmatmul.mubr.f32.gmra.mrb[0].mxu0 %v48
    %v134 = vpop.f32.mrb[0].mxu0
    %v135 = vadd.f32 0.0, %v134
    %v136 = vpop.f32.mrb[0].mxu0
    %137 = vmatprep.mubr.f32.mxu0 0.0
    %138 = vmatmul.mubr.f32.gmra.mrb[0].mxu0 %v49
    %v139 = vpop.f32.mrb[0].mxu0
    %v140 = vadd.f32 0.0, %v139
    %v141 = vpop.f32.mrb[0].mxu0
    %142 = vdwg.mxu0
    %v143 = vadd.f32 %v50, %v135
    %v144 = vadd.f32 %v51, %v140
    %145 = vst [vmem:[#allocation2] sm:$0xff] %v143
    %146 = vst [vmem:[#allocation2 + $0x8] sm:$0xff] %v144
    // Predicated region
    $region22: #{tpu_custom_call.1} parent=1 // pred_check
      %p147 = pneg %p42
    $region23: #{tpu_custom_call.1} parent=1 // pred_check_branch
      %149 = sbr.rel (%p147) target = $region25
    $region24: #{tpu_custom_call.1} parent=1 // pred_region
      %v150 = vld [vmem:[#allocation2] sm:$0xff]
      %v151 = vld [vmem:[#allocation2 + $0x8] sm:$0xff]
      %152 = vst [vmem:[#allocation10] sm:$0xff] %v150
      %153 = vst [vmem:[#allocation10 + $0x8] sm:$0xff] %v151
    $region25: #{tpu_custom_call.1} parent=1 // pred_fallthru
      _
    // Predicated region
    $region26: #{tpu_custom_call.1} parent=1 // pred_check
      _
    $region27: #{tpu_custom_call.1} parent=1 // pred_check_branch
      %155 = sbr.rel (0) target = $region29
    $region28: #{tpu_custom_call.1} parent=1 // pred_region
      %s157 = ssub.s32 256, 256
      %158 = vsyncadd [#allocation7], %s157
      %s159 = sshll.u32 [#allocation10], 4
      %s160 = int_to_ptr.vmem [resolvable:$true] %s159
      %165 = dma.vmem_to_hbm [thread:$0]  %s160, 256, %s3, [#allocation7], 128, 128, 8
    $region29: #{tpu_custom_call.1} parent=1 // pred_fallthru
      _
    // Predicated region
    $region30: #{tpu_custom_call.1} parent=1 // pred_check
      _
    $region31: #{tpu_custom_call.1} parent=1 // pred_check_branch
      %167 = sbr.rel (0) target = $region33
    $region32: #{tpu_custom_call.1} parent=1 // pred_region
      %168 = dma.done [#allocation7], 256
    $region33: #{tpu_custom_call.1} parent=1 // pred_fallthru
      _
    %169 = vsyncpa [#allocation6], 1
    %170 = vsyncpa [#allocation9], 1
    %171 = vsyncpa [#allocation7], 1

</llo_original>
